<compile_context>
chip_gen: v7x
topology: tpu7x:2x2x1
jax: 0.10.0
libtpu: 0.0.40
codegen_flags: <defaults>
</compile_context>

<pallas_src>
import numpy as np
import jax
import jax.numpy as jnp
from jax import lax
from jax.experimental import pallas as pl
from jax.experimental.pallas import tpu as pltpu


def _make_kernel(H, W):
    HW = H * W
    inv_hw = 1.0 / float(HW)

    def kernel(x_ref, w_ref, b_ref, mask_ref, out_ref):
        # x_ref   : (Bt, C, HW)  VMEM  input images, spatial axis lane-dense
        # w_ref   : (10, C)      SMEM  rows 0..8 = 3x3 taps (t = kh*3+kw), row 9 = fc weights
        # b_ref   : (2,)         SMEM  [conv_bias, fc_bias]
        # mask_ref: (9, HW)      VMEM  per-tap boundary-validity masks (output coords)
        # out_ref : (Bt, HW)     VMEM  conv3x3(x) + fc(avgpool(x)), lane-dense
        Bt = x_ref.shape[0]
        C = x_ref.shape[1]

        # ---- channel contraction: 10 per-tap planes, vectorized over the batch tile ----
        # TODO(synk): for very large C this unrolled scalar-FMA loop could be
        # replaced by an MXU dot over a transposed layout.
        planes = [jnp.zeros((Bt, HW), jnp.float32) for _ in range(10)]
        for c in range(C):
            xc = x_ref[:, c, :].astype(jnp.float32)              # (Bt, HW)
            for t in range(10):
                planes[t] = planes[t] + w_ref[t, c] * xc         # SMEM scalar * vector (VPU)

        # ---- squeeze-excite path: fc(avg_pool(x)) ----
        se = b_ref[1] + inv_hw * jnp.sum(planes[9], axis=-1, keepdims=True)   # (Bt, 1)

        # ---- 3x3 stencil: circular lane-rolls of the contracted planes + masks ----
        acc = jnp.zeros((Bt, HW), jnp.float32)
        for t in range(9):
            dh, dw = t // 3 - 1, t % 3 - 1
            off = dh * W + dw                                    # flattened tap offset
            sh = planes[t]
            if off != 0:
                # out[s] = plane[(s + off) mod HW]; wrapped entries are masked below
                sh = pltpu.roll(sh, (-off) % HW, 1)
            if dh != 0 or dw != 0:
                sh = sh * mask_ref[t:t + 1, :]                   # (1, HW) broadcast over batch
            acc = acc + sh

        out_ref[...] = (acc + (b_ref[0] + se)).astype(out_ref.dtype)

    return kernel


def _tap_masks(H, W):
    """(9, H*W) f32: mask[t, s] = 1 iff output pixel s has a valid input for tap t."""
    col = np.tile(np.arange(W), H)
    row = np.repeat(np.arange(H), W)
    masks = np.empty((9, H * W), np.float32)
    for t in range(9):
        dh, dw = t // 3 - 1, t % 3 - 1
        ok = np.ones(H * W, bool)
        if dh == -1:
            ok &= row > 0
        elif dh == 1:
            ok &= row < H - 1
        if dw == -1:
            ok &= col > 0
        elif dw == 1:
            ok &= col < W - 1
        masks[t] = ok.astype(np.float32)
    return masks


def _pick_batch_tile(B, C, HW, budget_bytes=2 << 20):
    """Largest batch tile whose live working set stays under the budget.
    Prefer the whole batch, then sublane-aligned (multiple-of-8) divisors of B."""
    per_image = (C + 14) * HW * 4          # input block + live planes/masks/acc (f32)
    cap = max(1, int(budget_bytes) // max(per_image, 1))
    if B <= cap:
        return B
    divisors = [d for d in range(1, B + 1) if B % d == 0 and d <= cap]
    aligned = [d for d in divisors if d % 8 == 0]
    return max(aligned) if aligned else max(divisors)


def squeeze_forward(x, fc_w, fc_b, conv_w, conv_b, stride=1):
    """Pallas TPU forward of dynconv `Squeeze`.

    x: (B, C, H, W); fc_w: (1, C); fc_b: (1,); conv_w: (1, C, 3, 3); conv_b: (1,).
    Returns (B, 1, H, W) = conv3x3(x, pad=1) + fc(avg_pool(x)).
    """
    # TODO(synk): stride > 1 not implemented (module default is stride=1).
    assert stride == 1, "only stride=1 implemented"
    B, C, H, W = x.shape
    HW = H * W

    xf = x.reshape(B, C, HW)                            # contiguous reshape: free

    # (10, C): rows 0..8 = conv taps (t = kh*3 + kw), row 9 = fc weights
    w_all = jnp.concatenate(
        [conv_w.reshape(C, 9).T, fc_w.reshape(1, C)], axis=0).astype(jnp.float32)
    biases = jnp.concatenate(
        [conv_b.reshape(1), fc_b.reshape(1)]).astype(jnp.float32)
    tap_masks = jnp.asarray(_tap_masks(H, W))           # (9, HW) compile-time constant

    Bt = _pick_batch_tile(B, C, HW)

    out = pl.pallas_call(
        _make_kernel(H, W),
        out_shape=jax.ShapeDtypeStruct((B, HW), jnp.float32),
        grid=(B // Bt,),
        in_specs=[
            pl.BlockSpec((Bt, C, HW), lambda i: (i, 0, 0)),
            pl.BlockSpec(memory_space=pltpu.MemorySpace.SMEM),   # weights (scalars)
            pl.BlockSpec(memory_space=pltpu.MemorySpace.SMEM),   # biases (scalars)
            pl.BlockSpec((9, HW), lambda i: (0, 0)),             # boundary masks
        ],
        out_specs=pl.BlockSpec((Bt, HW), lambda i: (i, 0)),
        compiler_params=pltpu.CompilerParams(dimension_semantics=("parallel",)),
    )(xf, w_all, biases, tap_masks)

    return out.reshape(B, 1, H, W)


def _reference(x, fc_w, fc_b, conv_w, conv_b):
    B, C, H, W = x.shape
    mean = x.mean(axis=(2, 3))                                              # (B, C)
    y = (mean * fc_w.reshape(1, C)).sum(axis=1, keepdims=True) + fc_b       # (B, 1)
    z = lax.conv_general_dilated(
        x, conv_w, window_strides=(1, 1), padding=((1, 1), (1, 1)),
        dimension_numbers=("NCHW", "OIHW", "NCHW"),
        precision=lax.Precision.HIGHEST,
    ) + conv_b.reshape(1, 1, 1, 1)
    return z + y.reshape(B, 1, 1, 1)


if __name__ == "__main__":
    key = jax.random.PRNGKey(0)
    k_x, k_fcw, k_fcb, k_cw, k_cb = jax.random.split(key, 5)

    B, C, H, W = 2, 4, 16, 16
    x = jax.random.normal(k_x, (B, C, H, W), jnp.float32)

    # deterministic parameter init (shapes from the module's __init__)
    fc_w = jax.random.normal(k_fcw, (1, C), jnp.float32) * 0.1          # nn.Linear(C, 1)
    fc_b = jax.random.normal(k_fcb, (1,), jnp.float32) * 0.1
    conv_w = jax.random.normal(k_cw, (1, C, 3, 3), jnp.float32) * 0.1   # nn.Conv2d(C, 1, 3, pad=1)
    conv_b = jax.random.normal(k_cb, (1,), jnp.float32) * 0.1

    out = squeeze_forward(x, fc_w, fc_b, conv_w, conv_b)
    out = jax.block_until_ready(out)

    ref = _reference(x, fc_w, fc_b, conv_w, conv_b)
    assert out.shape == (B, 1, H, W), out.shape
    err = float(jnp.max(jnp.abs(out - ref)))
    assert jnp.allclose(out, ref, rtol=1e-4, atol=1e-4), err

    print("KERNEL_OK")
</pallas_src>

<mosaic_0001>
module attributes {stable_mosaic.version = 11 : i64} {
  func.func @kernel(%arg0: i32, %arg1: memref<2x4x256xf32, #tpu.memory_space<vmem>>, %arg2: memref<10x4xf32, #tpu.memory_space<smem>>, %arg3: memref<2xf32, #tpu.memory_space<smem>>, %arg4: memref<9x256xf32, #tpu.memory_space<vmem>>, %arg5: memref<2x256xf32, #tpu.memory_space<vmem>>) attributes {dimension_semantics = [#tpu.dimension_semantics<parallel>], iteration_bounds = array<i64: 1>, scalar_prefetch = 0 : i64, scratch_operands = 0 : i64, tpu.core_type = #tpu.core_type<tc>, window_params = [{transform_indices = @transform_0, window_bounds = array<i64: 2, 4, 256>}, {transform_indices = @transform_1, window_bounds = array<i64: 10, 4>}, {transform_indices = @transform_2, window_bounds = array<i64: 2>}, {pipeline_mode = #tpu.pipeline_mode<synchronous>, transform_indices = @transform_3, window_bounds = array<i64: 9, 256>}, {transform_indices = @transform_4, window_bounds = array<i64: 2, 256>}]} {
    %cst = arith.constant 0.000000e+00 : f32
    %0 = vector.broadcast %cst : f32 to vector<2x256xf32>
    %cst_0 = arith.constant 0.000000e+00 : f32
    %1 = vector.broadcast %cst_0 : f32 to vector<2x256xf32>
    %cst_1 = arith.constant 0.000000e+00 : f32
    %2 = vector.broadcast %cst_1 : f32 to vector<2x256xf32>
    %cst_2 = arith.constant 0.000000e+00 : f32
    %3 = vector.broadcast %cst_2 : f32 to vector<2x256xf32>
    %cst_3 = arith.constant 0.000000e+00 : f32
    %4 = vector.broadcast %cst_3 : f32 to vector<2x256xf32>
    %cst_4 = arith.constant 0.000000e+00 : f32
    %5 = vector.broadcast %cst_4 : f32 to vector<2x256xf32>
    %cst_5 = arith.constant 0.000000e+00 : f32
    %6 = vector.broadcast %cst_5 : f32 to vector<2x256xf32>
    %cst_6 = arith.constant 0.000000e+00 : f32
    %7 = vector.broadcast %cst_6 : f32 to vector<2x256xf32>
    %cst_7 = arith.constant 0.000000e+00 : f32
    %8 = vector.broadcast %cst_7 : f32 to vector<2x256xf32>
    %cst_8 = arith.constant 0.000000e+00 : f32
    %9 = vector.broadcast %cst_8 : f32 to vector<2x256xf32>
    %c0 = arith.constant 0 : index
    %c0_9 = arith.constant 0 : index
    %c0_10 = arith.constant 0 : index
    %10 = vector.load %arg1[%c0, %c0_9, %c0_10] : memref<2x4x256xf32, #tpu.memory_space<vmem>>, vector<2x1x256xf32>
    %11 = vector.shape_cast %10 : vector<2x1x256xf32> to vector<2x256xf32>
    %c0_11 = arith.constant 0 : index
    %c0_12 = arith.constant 0 : index
    %12 = memref.load %arg2[%c0_11, %c0_12] : memref<10x4xf32, #tpu.memory_space<smem>>
    %13 = vector.broadcast %12 : f32 to vector<2x256xf32>
    %14 = arith.mulf %13, %11 : vector<2x256xf32>
    %15 = arith.addf %0, %14 : vector<2x256xf32>
    %c1 = arith.constant 1 : index
    %c0_13 = arith.constant 0 : index
    %16 = memref.load %arg2[%c1, %c0_13] : memref<10x4xf32, #tpu.memory_space<smem>>
    %17 = vector.broadcast %16 : f32 to vector<2x256xf32>
    %18 = arith.mulf %17, %11 : vector<2x256xf32>
    %19 = arith.addf %1, %18 : vector<2x256xf32>
    %c2 = arith.constant 2 : index
    %c0_14 = arith.constant 0 : index
    %20 = memref.load %arg2[%c2, %c0_14] : memref<10x4xf32, #tpu.memory_space<smem>>
    %21 = vector.broadcast %20 : f32 to vector<2x256xf32>
    %22 = arith.mulf %21, %11 : vector<2x256xf32>
    %23 = arith.addf %2, %22 : vector<2x256xf32>
    %c3 = arith.constant 3 : index
    %c0_15 = arith.constant 0 : index
    %24 = memref.load %arg2[%c3, %c0_15] : memref<10x4xf32, #tpu.memory_space<smem>>
    %25 = vector.broadcast %24 : f32 to vector<2x256xf32>
    %26 = arith.mulf %25, %11 : vector<2x256xf32>
    %27 = arith.addf %3, %26 : vector<2x256xf32>
    %c4 = arith.constant 4 : index
    %c0_16 = arith.constant 0 : index
    %28 = memref.load %arg2[%c4, %c0_16] : memref<10x4xf32, #tpu.memory_space<smem>>
    %29 = vector.broadcast %28 : f32 to vector<2x256xf32>
    %30 = arith.mulf %29, %11 : vector<2x256xf32>
    %31 = arith.addf %4, %30 : vector<2x256xf32>
    %c5 = arith.constant 5 : index
    %c0_17 = arith.constant 0 : index
    %32 = memref.load %arg2[%c5, %c0_17] : memref<10x4xf32, #tpu.memory_space<smem>>
    %33 = vector.broadcast %32 : f32 to vector<2x256xf32>
    %34 = arith.mulf %33, %11 : vector<2x256xf32>
    %35 = arith.addf %5, %34 : vector<2x256xf32>
    %c6 = arith.constant 6 : index
    %c0_18 = arith.constant 0 : index
    %36 = memref.load %arg2[%c6, %c0_18] : memref<10x4xf32, #tpu.memory_space<smem>>
    %37 = vector.broadcast %36 : f32 to vector<2x256xf32>
    %38 = arith.mulf %37, %11 : vector<2x256xf32>
    %39 = arith.addf %6, %38 : vector<2x256xf32>
    %c7 = arith.constant 7 : index
    %c0_19 = arith.constant 0 : index
    %40 = memref.load %arg2[%c7, %c0_19] : memref<10x4xf32, #tpu.memory_space<smem>>
    %41 = vector.broadcast %40 : f32 to vector<2x256xf32>
    %42 = arith.mulf %41, %11 : vector<2x256xf32>
    %43 = arith.addf %7, %42 : vector<2x256xf32>
    %c8 = arith.constant 8 : index
    %c0_20 = arith.constant 0 : index
    %44 = memref.load %arg2[%c8, %c0_20] : memref<10x4xf32, #tpu.memory_space<smem>>
    %45 = vector.broadcast %44 : f32 to vector<2x256xf32>
    %46 = arith.mulf %45, %11 : vector<2x256xf32>
    %47 = arith.addf %8, %46 : vector<2x256xf32>
    %c9 = arith.constant 9 : index
    %c0_21 = arith.constant 0 : index
    %48 = memref.load %arg2[%c9, %c0_21] : memref<10x4xf32, #tpu.memory_space<smem>>
    %49 = vector.broadcast %48 : f32 to vector<2x256xf32>
    %50 = arith.mulf %49, %11 : vector<2x256xf32>
    %51 = arith.addf %9, %50 : vector<2x256xf32>
    %c0_22 = arith.constant 0 : index
    %c1_23 = arith.constant 1 : index
    %c0_24 = arith.constant 0 : index
    %52 = vector.load %arg1[%c0_22, %c1_23, %c0_24] : memref<2x4x256xf32, #tpu.memory_space<vmem>>, vector<2x1x256xf32>
    %53 = vector.shape_cast %52 : vector<2x1x256xf32> to vector<2x256xf32>
    %c0_25 = arith.constant 0 : index
    %c1_26 = arith.constant 1 : index
    %54 = memref.load %arg2[%c0_25, %c1_26] : memref<10x4xf32, #tpu.memory_space<smem>>
    %55 = vector.broadcast %54 : f32 to vector<2x256xf32>
    %56 = arith.mulf %55, %53 : vector<2x256xf32>
    %57 = arith.addf %15, %56 : vector<2x256xf32>
    %c1_27 = arith.constant 1 : index
    %c1_28 = arith.constant 1 : index
    %58 = memref.load %arg2[%c1_27, %c1_28] : memref<10x4xf32, #tpu.memory_space<smem>>
    %59 = vector.broadcast %58 : f32 to vector<2x256xf32>
    %60 = arith.mulf %59, %53 : vector<2x256xf32>
    %61 = arith.addf %19, %60 : vector<2x256xf32>
    %c2_29 = arith.constant 2 : index
    %c1_30 = arith.constant 1 : index
    %62 = memref.load %arg2[%c2_29, %c1_30] : memref<10x4xf32, #tpu.memory_space<smem>>
    %63 = vector.broadcast %62 : f32 to vector<2x256xf32>
    %64 = arith.mulf %63, %53 : vector<2x256xf32>
    %65 = arith.addf %23, %64 : vector<2x256xf32>
    %c3_31 = arith.constant 3 : index
    %c1_32 = arith.constant 1 : index
    %66 = memref.load %arg2[%c3_31, %c1_32] : memref<10x4xf32, #tpu.memory_space<smem>>
    %67 = vector.broadcast %66 : f32 to vector<2x256xf32>
    %68 = arith.mulf %67, %53 : vector<2x256xf32>
    %69 = arith.addf %27, %68 : vector<2x256xf32>
    %c4_33 = arith.constant 4 : index
    %c1_34 = arith.constant 1 : index
    %70 = memref.load %arg2[%c4_33, %c1_34] : memref<10x4xf32, #tpu.memory_space<smem>>
    %71 = vector.broadcast %70 : f32 to vector<2x256xf32>
    %72 = arith.mulf %71, %53 : vector<2x256xf32>
    %73 = arith.addf %31, %72 : vector<2x256xf32>
    %c5_35 = arith.constant 5 : index
    %c1_36 = arith.constant 1 : index
    %74 = memref.load %arg2[%c5_35, %c1_36] : memref<10x4xf32, #tpu.memory_space<smem>>
    %75 = vector.broadcast %74 : f32 to vector<2x256xf32>
    %76 = arith.mulf %75, %53 : vector<2x256xf32>
    %77 = arith.addf %35, %76 : vector<2x256xf32>
    %c6_37 = arith.constant 6 : index
    %c1_38 = arith.constant 1 : index
    %78 = memref.load %arg2[%c6_37, %c1_38] : memref<10x4xf32, #tpu.memory_space<smem>>
    %79 = vector.broadcast %78 : f32 to vector<2x256xf32>
    %80 = arith.mulf %79, %53 : vector<2x256xf32>
    %81 = arith.addf %39, %80 : vector<2x256xf32>
    %c7_39 = arith.constant 7 : index
    %c1_40 = arith.constant 1 : index
    %82 = memref.load %arg2[%c7_39, %c1_40] : memref<10x4xf32, #tpu.memory_space<smem>>
    %83 = vector.broadcast %82 : f32 to vector<2x256xf32>
    %84 = arith.mulf %83, %53 : vector<2x256xf32>
    %85 = arith.addf %43, %84 : vector<2x256xf32>
    %c8_41 = arith.constant 8 : index
    %c1_42 = arith.constant 1 : index
    %86 = memref.load %arg2[%c8_41, %c1_42] : memref<10x4xf32, #tpu.memory_space<smem>>
    %87 = vector.broadcast %86 : f32 to vector<2x256xf32>
    %88 = arith.mulf %87, %53 : vector<2x256xf32>
    %89 = arith.addf %47, %88 : vector<2x256xf32>
    %c9_43 = arith.constant 9 : index
    %c1_44 = arith.constant 1 : index
    %90 = memref.load %arg2[%c9_43, %c1_44] : memref<10x4xf32, #tpu.memory_space<smem>>
    %91 = vector.broadcast %90 : f32 to vector<2x256xf32>
    %92 = arith.mulf %91, %53 : vector<2x256xf32>
    %93 = arith.addf %51, %92 : vector<2x256xf32>
    %c0_45 = arith.constant 0 : index
    %c2_46 = arith.constant 2 : index
    %c0_47 = arith.constant 0 : index
    %94 = vector.load %arg1[%c0_45, %c2_46, %c0_47] : memref<2x4x256xf32, #tpu.memory_space<vmem>>, vector<2x1x256xf32>
    %95 = vector.shape_cast %94 : vector<2x1x256xf32> to vector<2x256xf32>
    %c0_48 = arith.constant 0 : index
    %c2_49 = arith.constant 2 : index
    %96 = memref.load %arg2[%c0_48, %c2_49] : memref<10x4xf32, #tpu.memory_space<smem>>
    %97 = vector.broadcast %96 : f32 to vector<2x256xf32>
    %98 = arith.mulf %97, %95 : vector<2x256xf32>
    %99 = arith.addf %57, %98 : vector<2x256xf32>
    %c1_50 = arith.constant 1 : index
    %c2_51 = arith.constant 2 : index
    %100 = memref.load %arg2[%c1_50, %c2_51] : memref<10x4xf32, #tpu.memory_space<smem>>
    %101 = vector.broadcast %100 : f32 to vector<2x256xf32>
    %102 = arith.mulf %101, %95 : vector<2x256xf32>
    %103 = arith.addf %61, %102 : vector<2x256xf32>
    %c2_52 = arith.constant 2 : index
    %c2_53 = arith.constant 2 : index
    %104 = memref.load %arg2[%c2_52, %c2_53] : memref<10x4xf32, #tpu.memory_space<smem>>
    %105 = vector.broadcast %104 : f32 to vector<2x256xf32>
    %106 = arith.mulf %105, %95 : vector<2x256xf32>
    %107 = arith.addf %65, %106 : vector<2x256xf32>
    %c3_54 = arith.constant 3 : index
    %c2_55 = arith.constant 2 : index
    %108 = memref.load %arg2[%c3_54, %c2_55] : memref<10x4xf32, #tpu.memory_space<smem>>
    %109 = vector.broadcast %108 : f32 to vector<2x256xf32>
    %110 = arith.mulf %109, %95 : vector<2x256xf32>
    %111 = arith.addf %69, %110 : vector<2x256xf32>
    %c4_56 = arith.constant 4 : index
    %c2_57 = arith.constant 2 : index
    %112 = memref.load %arg2[%c4_56, %c2_57] : memref<10x4xf32, #tpu.memory_space<smem>>
    %113 = vector.broadcast %112 : f32 to vector<2x256xf32>
    %114 = arith.mulf %113, %95 : vector<2x256xf32>
    %115 = arith.addf %73, %114 : vector<2x256xf32>
    %c5_58 = arith.constant 5 : index
    %c2_59 = arith.constant 2 : index
    %116 = memref.load %arg2[%c5_58, %c2_59] : memref<10x4xf32, #tpu.memory_space<smem>>
    %117 = vector.broadcast %116 : f32 to vector<2x256xf32>
    %118 = arith.mulf %117, %95 : vector<2x256xf32>
    %119 = arith.addf %77, %118 : vector<2x256xf32>
    %c6_60 = arith.constant 6 : index
    %c2_61 = arith.constant 2 : index
    %120 = memref.load %arg2[%c6_60, %c2_61] : memref<10x4xf32, #tpu.memory_space<smem>>
    %121 = vector.broadcast %120 : f32 to vector<2x256xf32>
    %122 = arith.mulf %121, %95 : vector<2x256xf32>
    %123 = arith.addf %81, %122 : vector<2x256xf32>
    %c7_62 = arith.constant 7 : index
    %c2_63 = arith.constant 2 : index
    %124 = memref.load %arg2[%c7_62, %c2_63] : memref<10x4xf32, #tpu.memory_space<smem>>
    %125 = vector.broadcast %124 : f32 to vector<2x256xf32>
    %126 = arith.mulf %125, %95 : vector<2x256xf32>
    %127 = arith.addf %85, %126 : vector<2x256xf32>
    %c8_64 = arith.constant 8 : index
    %c2_65 = arith.constant 2 : index
    %128 = memref.load %arg2[%c8_64, %c2_65] : memref<10x4xf32, #tpu.memory_space<smem>>
    %129 = vector.broadcast %128 : f32 to vector<2x256xf32>
    %130 = arith.mulf %129, %95 : vector<2x256xf32>
    %131 = arith.addf %89, %130 : vector<2x256xf32>
    %c9_66 = arith.constant 9 : index
    %c2_67 = arith.constant 2 : index
    %132 = memref.load %arg2[%c9_66, %c2_67] : memref<10x4xf32, #tpu.memory_space<smem>>
    %133 = vector.broadcast %132 : f32 to vector<2x256xf32>
    %134 = arith.mulf %133, %95 : vector<2x256xf32>
    %135 = arith.addf %93, %134 : vector<2x256xf32>
    %c0_68 = arith.constant 0 : index
    %c3_69 = arith.constant 3 : index
    %c0_70 = arith.constant 0 : index
    %136 = vector.load %arg1[%c0_68, %c3_69, %c0_70] : memref<2x4x256xf32, #tpu.memory_space<vmem>>, vector<2x1x256xf32>
    %137 = vector.shape_cast %136 : vector<2x1x256xf32> to vector<2x256xf32>
    %c0_71 = arith.constant 0 : index
    %c3_72 = arith.constant 3 : index
    %138 = memref.load %arg2[%c0_71, %c3_72] : memref<10x4xf32, #tpu.memory_space<smem>>
    %139 = vector.broadcast %138 : f32 to vector<2x256xf32>
    %140 = arith.mulf %139, %137 : vector<2x256xf32>
    %141 = arith.addf %99, %140 : vector<2x256xf32>
    %c1_73 = arith.constant 1 : index
    %c3_74 = arith.constant 3 : index
    %142 = memref.load %arg2[%c1_73, %c3_74] : memref<10x4xf32, #tpu.memory_space<smem>>
    %143 = vector.broadcast %142 : f32 to vector<2x256xf32>
    %144 = arith.mulf %143, %137 : vector<2x256xf32>
    %145 = arith.addf %103, %144 : vector<2x256xf32>
    %c2_75 = arith.constant 2 : index
    %c3_76 = arith.constant 3 : index
    %146 = memref.load %arg2[%c2_75, %c3_76] : memref<10x4xf32, #tpu.memory_space<smem>>
    %147 = vector.broadcast %146 : f32 to vector<2x256xf32>
    %148 = arith.mulf %147, %137 : vector<2x256xf32>
    %149 = arith.addf %107, %148 : vector<2x256xf32>
    %c3_77 = arith.constant 3 : index
    %c3_78 = arith.constant 3 : index
    %150 = memref.load %arg2[%c3_77, %c3_78] : memref<10x4xf32, #tpu.memory_space<smem>>
    %151 = vector.broadcast %150 : f32 to vector<2x256xf32>
    %152 = arith.mulf %151, %137 : vector<2x256xf32>
    %153 = arith.addf %111, %152 : vector<2x256xf32>
    %c4_79 = arith.constant 4 : index
    %c3_80 = arith.constant 3 : index
    %154 = memref.load %arg2[%c4_79, %c3_80] : memref<10x4xf32, #tpu.memory_space<smem>>
    %155 = vector.broadcast %154 : f32 to vector<2x256xf32>
    %156 = arith.mulf %155, %137 : vector<2x256xf32>
    %157 = arith.addf %115, %156 : vector<2x256xf32>
    %c5_81 = arith.constant 5 : index
    %c3_82 = arith.constant 3 : index
    %158 = memref.load %arg2[%c5_81, %c3_82] : memref<10x4xf32, #tpu.memory_space<smem>>
    %159 = vector.broadcast %158 : f32 to vector<2x256xf32>
    %160 = arith.mulf %159, %137 : vector<2x256xf32>
    %161 = arith.addf %119, %160 : vector<2x256xf32>
    %c6_83 = arith.constant 6 : index
    %c3_84 = arith.constant 3 : index
    %162 = memref.load %arg2[%c6_83, %c3_84] : memref<10x4xf32, #tpu.memory_space<smem>>
    %163 = vector.broadcast %162 : f32 to vector<2x256xf32>
    %164 = arith.mulf %163, %137 : vector<2x256xf32>
    %165 = arith.addf %123, %164 : vector<2x256xf32>
    %c7_85 = arith.constant 7 : index
    %c3_86 = arith.constant 3 : index
    %166 = memref.load %arg2[%c7_85, %c3_86] : memref<10x4xf32, #tpu.memory_space<smem>>
    %167 = vector.broadcast %166 : f32 to vector<2x256xf32>
    %168 = arith.mulf %167, %137 : vector<2x256xf32>
    %169 = arith.addf %127, %168 : vector<2x256xf32>
    %c8_87 = arith.constant 8 : index
    %c3_88 = arith.constant 3 : index
    %170 = memref.load %arg2[%c8_87, %c3_88] : memref<10x4xf32, #tpu.memory_space<smem>>
    %171 = vector.broadcast %170 : f32 to vector<2x256xf32>
    %172 = arith.mulf %171, %137 : vector<2x256xf32>
    %173 = arith.addf %131, %172 : vector<2x256xf32>
    %c9_89 = arith.constant 9 : index
    %c3_90 = arith.constant 3 : index
    %174 = memref.load %arg2[%c9_89, %c3_90] : memref<10x4xf32, #tpu.memory_space<smem>>
    %175 = vector.broadcast %174 : f32 to vector<2x256xf32>
    %176 = arith.mulf %175, %137 : vector<2x256xf32>
    %177 = arith.addf %135, %176 : vector<2x256xf32>
    %c1_91 = arith.constant 1 : index
    %178 = memref.load %arg3[%c1_91] : memref<2xf32, #tpu.memory_space<smem>>
    %cst_92 = arith.constant dense<0.000000e+00> : vector<2xf32>
    %179 = vector.multi_reduction <add>, %177, %cst_92 [1] : vector<2x256xf32> to vector<2xf32>
    %180 = vector.shape_cast %179 : vector<2xf32> to vector<2x1xf32>
    %cst_93 = arith.constant 3.906250e-03 : f32
    %181 = vector.broadcast %cst_93 : f32 to vector<2x1xf32>
    %182 = arith.mulf %181, %180 : vector<2x1xf32>
    %183 = vector.broadcast %178 : f32 to vector<2x1xf32>
    %184 = arith.addf %183, %182 : vector<2x1xf32>
    %cst_94 = arith.constant 0.000000e+00 : f32
    %185 = vector.broadcast %cst_94 : f32 to vector<2x256xf32>
    %c17_i32 = arith.constant 17 : i32
    %186 = tpu.dynamic_rotate %141 by %c17_i32 dim 1 : vector<2x256xf32>, i32 -> vector<2x256xf32>
    %c0_95 = arith.constant 0 : index
    %c0_96 = arith.constant 0 : index
    %187 = vector.load %arg4[%c0_95, %c0_96] : memref<9x256xf32, #tpu.memory_space<vmem>>, vector<1x256xf32>
    %188 = vector.broadcast %187 : vector<1x256xf32> to vector<2x256xf32>
    %189 = arith.mulf %186, %188 : vector<2x256xf32>
    %190 = arith.addf %185, %189 : vector<2x256xf32>
    %c16_i32 = arith.constant 16 : i32
    %191 = tpu.dynamic_rotate %145 by %c16_i32 dim 1 : vector<2x256xf32>, i32 -> vector<2x256xf32>
    %c1_97 = arith.constant 1 : index
    %c0_98 = arith.constant 0 : index
    %192 = vector.load %arg4[%c1_97, %c0_98] : memref<9x256xf32, #tpu.memory_space<vmem>>, vector<1x256xf32>
    %193 = vector.broadcast %192 : vector<1x256xf32> to vector<2x256xf32>
    %194 = arith.mulf %191, %193 : vector<2x256xf32>
    %195 = arith.addf %190, %194 : vector<2x256xf32>
    %c15_i32 = arith.constant 15 : i32
    %196 = tpu.dynamic_rotate %149 by %c15_i32 dim 1 : vector<2x256xf32>, i32 -> vector<2x256xf32>
    %c2_99 = arith.constant 2 : index
    %c0_100 = arith.constant 0 : index
    %197 = vector.load %arg4[%c2_99, %c0_100] : memref<9x256xf32, #tpu.memory_space<vmem>>, vector<1x256xf32>
    %198 = vector.broadcast %197 : vector<1x256xf32> to vector<2x256xf32>
    %199 = arith.mulf %196, %198 : vector<2x256xf32>
    %200 = arith.addf %195, %199 : vector<2x256xf32>
    %c1_i32 = arith.constant 1 : i32
    %201 = tpu.dynamic_rotate %153 by %c1_i32 dim 1 : vector<2x256xf32>, i32 -> vector<2x256xf32>
    %c3_101 = arith.constant 3 : index
    %c0_102 = arith.constant 0 : index
    %202 = vector.load %arg4[%c3_101, %c0_102] : memref<9x256xf32, #tpu.memory_space<vmem>>, vector<1x256xf32>
    %203 = vector.broadcast %202 : vector<1x256xf32> to vector<2x256xf32>
    %204 = arith.mulf %201, %203 : vector<2x256xf32>
    %205 = arith.addf %200, %204 : vector<2x256xf32>
    %206 = arith.addf %205, %157 : vector<2x256xf32>
    %c255_i32 = arith.constant 255 : i32
    %207 = tpu.dynamic_rotate %161 by %c255_i32 dim 1 : vector<2x256xf32>, i32 -> vector<2x256xf32>
    %c5_103 = arith.constant 5 : index
    %c0_104 = arith.constant 0 : index
    %208 = vector.load %arg4[%c5_103, %c0_104] : memref<9x256xf32, #tpu.memory_space<vmem>>, vector<1x256xf32>
    %209 = vector.broadcast %208 : vector<1x256xf32> to vector<2x256xf32>
    %210 = arith.mulf %207, %209 : vector<2x256xf32>
    %211 = arith.addf %206, %210 : vector<2x256xf32>
    %c241_i32 = arith.constant 241 : i32
    %212 = tpu.dynamic_rotate %165 by %c241_i32 dim 1 : vector<2x256xf32>, i32 -> vector<2x256xf32>
    %c6_105 = arith.constant 6 : index
    %c0_106 = arith.constant 0 : index
    %213 = vector.load %arg4[%c6_105, %c0_106] : memref<9x256xf32, #tpu.memory_space<vmem>>, vector<1x256xf32>
    %214 = vector.broadcast %213 : vector<1x256xf32> to vector<2x256xf32>
    %215 = arith.mulf %212, %214 : vector<2x256xf32>
    %216 = arith.addf %211, %215 : vector<2x256xf32>
    %c240_i32 = arith.constant 240 : i32
    %217 = tpu.dynamic_rotate %169 by %c240_i32 dim 1 : vector<2x256xf32>, i32 -> vector<2x256xf32>
    %c7_107 = arith.constant 7 : index
    %c0_108 = arith.constant 0 : index
    %218 = vector.load %arg4[%c7_107, %c0_108] : memref<9x256xf32, #tpu.memory_space<vmem>>, vector<1x256xf32>
    %219 = vector.broadcast %218 : vector<1x256xf32> to vector<2x256xf32>
    %220 = arith.mulf %217, %219 : vector<2x256xf32>
    %221 = arith.addf %216, %220 : vector<2x256xf32>
    %c239_i32 = arith.constant 239 : i32
    %222 = tpu.dynamic_rotate %173 by %c239_i32 dim 1 : vector<2x256xf32>, i32 -> vector<2x256xf32>
    %c8_109 = arith.constant 8 : index
    %c0_110 = arith.constant 0 : index
    %223 = vector.load %arg4[%c8_109, %c0_110] : memref<9x256xf32, #tpu.memory_space<vmem>>, vector<1x256xf32>
    %224 = vector.broadcast %223 : vector<1x256xf32> to vector<2x256xf32>
    %225 = arith.mulf %222, %224 : vector<2x256xf32>
    %226 = arith.addf %221, %225 : vector<2x256xf32>
    %c0_111 = arith.constant 0 : index
    %227 = memref.load %arg3[%c0_111] : memref<2xf32, #tpu.memory_space<smem>>
    %228 = vector.broadcast %227 : f32 to vector<2x1xf32>
    %229 = arith.addf %228, %184 : vector<2x1xf32>
    %230 = vector.broadcast %229 : vector<2x1xf32> to vector<2x256xf32>
    %231 = arith.addf %226, %230 : vector<2x256xf32>
    %c0_112 = arith.constant 0 : index
    %c0_113 = arith.constant 0 : index
    %232 = vector.load %arg5[%c0_112, %c0_113] : memref<2x256xf32, #tpu.memory_space<vmem>>, vector<2x256xf32>
    tpu.vector_store %arg5[%c0_112, %c0_113], %231 {strides = array<i32>} : memref<2x256xf32, #tpu.memory_space<vmem>>, vector<2x256xf32>,
    return
  }
  func.func @transform_0(%arg0: i32) -> (i32, i32, i32) {
    %c0_i32 = arith.constant 0 : i32
    %c0_i32_0 = arith.constant 0 : i32
    %c0_i32_1 = arith.constant 0 : i32
    return %arg0, %c0_i32, %c0_i32_0 : i32, i32, i32
  }
  func.func @transform_1(%arg0: i32) -> (i32, i32) {
    %c0_i32 = arith.constant 0 : i32
    %c0_i32_0 = arith.constant 0 : i32
    %c0_i32_1 = arith.constant 0 : i32
    return %c0_i32, %c0_i32_0 : i32, i32
  }
  func.func @transform_2(%arg0: i32) -> i32 {
    %c0_i32 = arith.constant 0 : i32
    %c0_i32_0 = arith.constant 0 : i32
    return %c0_i32 : i32
  }
  func.func @transform_3(%arg0: i32) -> (i32, i32) {
    %c0_i32 = arith.constant 0 : i32
    %c0_i32_0 = arith.constant 0 : i32
    %c0_i32_1 = arith.constant 0 : i32
    return %c0_i32, %c0_i32_0 : i32, i32
  }
  func.func @transform_4(%arg0: i32) -> (i32, i32) {
    %c0_i32 = arith.constant 0 : i32
    %c0_i32_0 = arith.constant 0 : i32
    return %arg0, %c0_i32 : i32, i32
  }
}

</mosaic_0001>

<llo_original>
// kernel: tpu_custom_call.1
$region0: #{tpu_custom_call.1}
  #allocation0 [shape = 'u32[]', space=smem, size = 0x4, offset = 0x4, fixed_abs, tag = 'smem constant byte address 0x4 - core index']
  #allocation1 [shape = 'u32[144,128]{1,0:T(1,128)}', space=vmem, size = 0x12000, scoped, tag = 'internal scratch']
  %s0 = inlined_call_operand.vmem [shape: f32[2,4,256], index: 0, kind: input, shape index: {}]
  %s1 = inlined_call_operand.vmem [shape: f32[10,4], index: 1, kind: input, shape index: {}]
  %s2 = inlined_call_operand.vmem [shape: f32[2], index: 2, kind: input, shape index: {}]
  %s3 = inlined_call_operand.hbm [shape: f32[9,256], index: 3, kind: input, shape index: {}]
  %s4 = inlined_call_operand.hbm [shape: f32[2,256], index: 4, kind: output, shape index: {}]
  %s5 = sld [smem:[#allocation0]]
  $region38: #{tpu_custom_call.1} parent=0
    _
  %s7 = ssub.s32 1, %s5
  %s8 = scalar_select 0, %s7, %s5
  $region1: #{tpu_custom_call.1} parent=0
    #allocation2 [shape = 'u8[8192]{0}', space=smem, size = 0x2000, scoped, tag = 'input window, operand 1, single buffered']
    #allocation3 [shape = 's32[1]{0}', space=sflag, size = 0x4, scoped, tag = 'scoped memory for tpu_custom_call.1']
    #allocation4 [shape = 's32[1]{0}', space=sflag, size = 0x4, scoped, tag = 'scoped memory for tpu_custom_call.1']
    #allocation5 [shape = 's32[1]{0}', space=sflag, size = 0x4, scoped, tag = 'scoped memory for tpu_custom_call.1']
    #allocation6 [shape = 'u8[512]{0}', space=smem, size = 0x200, scoped, tag = 'input window, operand 2, single buffered']
    #allocation7 [shape = 's32[1]{0}', space=sflag, size = 0x4, scoped, tag = 'scoped memory for tpu_custom_call.1']
    #allocation8 [shape = 'u8[16384]{0}', space=vmem, size = 0x4000, scoped, tag = 'input window, operand 3, single buffered']
    #allocation9 [shape = 'u8[2048]{0}', space=vmem, size = 0x800, scoped, tag = 'output window, operand 0, single buffered']
    %9 = vsyncpa [#allocation5], 0
    %10 = vsyncpa [#allocation7], 0
    %11 = vsyncpa [#allocation3], 0
    %12 = vsyncpa [#allocation4], 0
    // Predicated region
    $region2: #{tpu_custom_call.1} parent=1 // pred_check
      _
    $region3: #{tpu_custom_call.1} parent=1 // pred_check_branch
      %14 = sbr.rel (0) target = $region5
    $region4: #{tpu_custom_call.1} parent=1 // pred_region
      _
    $region5: #{tpu_custom_call.1} parent=1 // pred_fallthru
      _
    // Predicated region
    $region6: #{tpu_custom_call.1} parent=1 // pred_check
      _
    $region7: #{tpu_custom_call.1} parent=1 // pred_check_branch
      %16 = sbr.rel (0) target = $region9
    $region8: #{tpu_custom_call.1} parent=1 // pred_region
      %s18 = ssub.s32 256, 256
      %19 = vsyncadd [#allocation5], %s18
      %s20 = sshll.u32 %s1, 4
      %s21 = int_to_ptr.vmem [resolvable:$true] %s20
      %26 = dma.vmem_to_smem %s21, 256, [#allocation2], [#allocation5], 128, 128, 8
    $region9: #{tpu_custom_call.1} parent=1 // pred_fallthru
      _
    // Predicated region
    $region10: #{tpu_custom_call.1} parent=1 // pred_check
      _
    $region11: #{tpu_custom_call.1} parent=1 // pred_check_branch
      %28 = sbr.rel (0) target = $region13
    $region12: #{tpu_custom_call.1} parent=1 // pred_region
      %s30 = ssub.s32 16, 16
      %31 = vsyncadd [#allocation7], %s30
      %s33 = sshll.u32 %s2, 4
      %s34 = int_to_ptr.vmem [resolvable:$true] %s33
      %36 = dma.vmem_to_smem %s34, 16, [#allocation6], [#allocation7]
    $region13: #{tpu_custom_call.1} parent=1 // pred_fallthru
      _
    // Predicated region
    $region14: #{tpu_custom_call.1} parent=1 // pred_check
      _
    $region15: #{tpu_custom_call.1} parent=1 // pred_check_branch
      %38 = sbr.rel (0) target = $region17
    $region16: #{tpu_custom_call.1} parent=1 // pred_region
      %s40 = ssub.s32 512, 512
      %41 = vsyncadd [#allocation3], %s40
      %s42 = sshll.u32 [#allocation8], 4
      %s43 = int_to_ptr.vmem [resolvable:$true] %s42
      %48 = dma.hbm_to_vmem [thread:$0]  %s3, 512, %s43, [#allocation3], 256, 256, 16
    $region17: #{tpu_custom_call.1} parent=1 // pred_fallthru
      _
    // Predicated region
    $region18: #{tpu_custom_call.1} parent=1 // pred_check
      _
    $region19: #{tpu_custom_call.1} parent=1 // pred_check_branch
      %50 = sbr.rel (0) target = $region21
    $region20: #{tpu_custom_call.1} parent=1 // pred_region
      %51 = dma.done [#allocation5], 256
    $region21: #{tpu_custom_call.1} parent=1 // pred_fallthru
      _
    // Predicated region
    $region22: #{tpu_custom_call.1} parent=1 // pred_check
      _
    $region23: #{tpu_custom_call.1} parent=1 // pred_check_branch
      %53 = sbr.rel (0) target = $region25
    $region24: #{tpu_custom_call.1} parent=1 // pred_region
      %54 = dma.done [#allocation7], 16
    $region25: #{tpu_custom_call.1} parent=1 // pred_fallthru
      _
    // Predicated region
    $region26: #{tpu_custom_call.1} parent=1 // pred_check
      _
    $region27: #{tpu_custom_call.1} parent=1 // pred_check_branch
      %56 = sbr.rel (0) target = $region29
    $region28: #{tpu_custom_call.1} parent=1 // pred_region
      %57 = dma.done [#allocation3], 512
    $region29: #{tpu_custom_call.1} parent=1 // pred_fallthru
      _
    %58 = sfence
    %v59 = vld [vmem:[%s0] ss:$4 sm:$0x3]
    %s60 = scalar_lea.vmem %s0, 8
    %v61 = vld [vmem:[%s60] ss:$4 sm:$0x3]
    %s62 = sld [smem:[#allocation2]]
    %v63 = vstv %s62
    %v64 = vmul.f32 %v63, %v59
    %v65 = vmul.f32 %v63, %v61
    %v66 = vadd.f32 %v64, 0.0
    %v67 = vadd.f32 %v65, 0.0
    %s68 = sld [smem:[#allocation2 + $0x80]]
    %v69 = vstv %s68
    %v70 = vmul.f32 %v69, %v59
    %v71 = vmul.f32 %v69, %v61
    %v72 = vadd.f32 %v70, 0.0
    %v73 = vadd.f32 %v71, 0.0
    %s74 = sld [smem:[#allocation2 + $0x100]]
    %v75 = vstv %s74
    %v76 = vmul.f32 %v75, %v59
    %v77 = vmul.f32 %v75, %v61
    %v78 = vadd.f32 %v76, 0.0
    %v79 = vadd.f32 %v77, 0.0
    %s80 = sld [smem:[#allocation2 + $0x180]]
    %v81 = vstv %s80
    %v82 = vmul.f32 %v81, %v59
    %v83 = vmul.f32 %v81, %v61
    %v84 = vadd.f32 %v82, 0.0
    %v85 = vadd.f32 %v83, 0.0
    %s86 = sld [smem:[#allocation2 + $0x200]]
    %v87 = vstv %s86
    %v88 = vmul.f32 %v87, %v59
    %v89 = vmul.f32 %v87, %v61
    %v90 = vadd.f32 %v88, 0.0
    %v91 = vadd.f32 %v89, 0.0
    %s92 = sld [smem:[#allocation2 + $0x280]]
    %v93 = vstv %s92
    %v94 = vmul.f32 %v93, %v59
    %v95 = vmul.f32 %v93, %v61
    %v96 = vadd.f32 %v94, 0.0
    %v97 = vadd.f32 %v95, 0.0
    %s98 = sld [smem:[#allocation2 + $0x300]]
    %v99 = vstv %s98
    %v100 = vmul.f32 %v99, %v59
    %v101 = vmul.f32 %v99, %v61
    %v102 = vadd.f32 %v100, 0.0
    %v103 = vadd.f32 %v101, 0.0
    %s104 = sld [smem:[#allocation2 + $0x380]]
    %v105 = vstv %s104
    %v106 = vmul.f32 %v105, %v59
    %v107 = vmul.f32 %v105, %v61
    %v108 = vadd.f32 %v106, 0.0
    %v109 = vadd.f32 %v107, 0.0
    %s110 = sld [smem:[#allocation2 + $0x400]]
    %v111 = vstv %s110
    %v112 = vmul.f32 %v111, %v59
    %v113 = vmul.f32 %v111, %v61
    %v114 = vadd.f32 %v112, 0.0
    %v115 = vadd.f32 %v113, 0.0
    %s116 = sld [smem:[#allocation2 + $0x480]]
    %v117 = vstv %s116
    %v118 = vmul.f32 %v117, %v59
    %v119 = vmul.f32 %v117, %v61
    %v120 = vadd.f32 %v118, 0.0
    %v121 = vadd.f32 %v119, 0.0
    %s122 = scalar_lea.vmem %s0, 1
    %v123 = vld [vmem:[%s122] ss:$4 sm:$0x3]
    %s124 = scalar_lea.vmem %s0, 9
    %v125 = vld [vmem:[%s124] ss:$4 sm:$0x3]
    %s126 = sld [smem:[#allocation2 + $0x1]]
    %v127 = vstv %s126
    %v128 = vmul.f32 %v127, %v123
    %v129 = vmul.f32 %v127, %v125
    %v130 = vadd.f32 %v66, %v128
    %v131 = vadd.f32 %v67, %v129
    %s132 = sld [smem:[#allocation2 + $0x81]]
    %v133 = vstv %s132
    %v134 = vmul.f32 %v133, %v123
    %v135 = vmul.f32 %v133, %v125
    %v136 = vadd.f32 %v72, %v134
    %v137 = vadd.f32 %v73, %v135
    %s138 = sld [smem:[#allocation2 + $0x101]]
    %v139 = vstv %s138
    %v140 = vmul.f32 %v139, %v123
    %v141 = vmul.f32 %v139, %v125
    %v142 = vadd.f32 %v78, %v140
    %v143 = vadd.f32 %v79, %v141
    %s144 = sld [smem:[#allocation2 + $0x181]]
    %v145 = vstv %s144
    %v146 = vmul.f32 %v145, %v123
    %v147 = vmul.f32 %v145, %v125
    %v148 = vadd.f32 %v84, %v146
    %v149 = vadd.f32 %v85, %v147
    %s150 = sld [smem:[#allocation2 + $0x201]]
    %v151 = vstv %s150
    %v152 = vmul.f32 %v151, %v123
    %v153 = vmul.f32 %v151, %v125
    %v154 = vadd.f32 %v90, %v152
    %v155 = vadd.f32 %v91, %v153
    %s156 = sld [smem:[#allocation2 + $0x281]]
    %v157 = vstv %s156
    %v158 = vmul.f32 %v157, %v123
    %v159 = vmul.f32 %v157, %v125
    %v160 = vadd.f32 %v96, %v158
    %v161 = vadd.f32 %v97, %v159
    %s162 = sld [smem:[#allocation2 + $0x301]]
    %v163 = vstv %s162
    %v164 = vmul.f32 %v163, %v123
    %v165 = vmul.f32 %v163, %v125
    %v166 = vadd.f32 %v102, %v164
    %v167 = vadd.f32 %v103, %v165
    %s168 = sld [smem:[#allocation2 + $0x381]]
    %v169 = vstv %s168
    %v170 = vmul.f32 %v169, %v123
    %v171 = vmul.f32 %v169, %v125
    %v172 = vadd.f32 %v108, %v170
    %v173 = vadd.f32 %v109, %v171
    %s174 = sld [smem:[#allocation2 + $0x401]]
    %v175 = vstv %s174
    %v176 = vmul.f32 %v175, %v123
    %v177 = vmul.f32 %v175, %v125
    %v178 = vadd.f32 %v114, %v176
    %v179 = vadd.f32 %v115, %v177
    %s180 = sld [smem:[#allocation2 + $0x481]]
    %v181 = vstv %s180
    %v182 = vmul.f32 %v181, %v123
    %v183 = vmul.f32 %v181, %v125
    %v184 = vadd.f32 %v120, %v182
    %v185 = vadd.f32 %v121, %v183
    %s186 = scalar_lea.vmem %s0, 2
    %v187 = vld [vmem:[%s186] ss:$4 sm:$0x3]
    %s188 = scalar_lea.vmem %s0, 10
    %v189 = vld [vmem:[%s188] ss:$4 sm:$0x3]
    %s190 = sld [smem:[#allocation2 + $0x2]]
    %v191 = vstv %s190
    %v192 = vmul.f32 %v191, %v187
    %v193 = vmul.f32 %v191, %v189
    %v194 = vadd.f32 %v130, %v192
    %v195 = vadd.f32 %v131, %v193
    %s196 = sld [smem:[#allocation2 + $0x82]]
    %v197 = vstv %s196
    %v198 = vmul.f32 %v197, %v187
    %v199 = vmul.f32 %v197, %v189
    %v200 = vadd.f32 %v136, %v198
    %v201 = vadd.f32 %v137, %v199
    %s202 = sld [smem:[#allocation2 + $0x102]]
    %v203 = vstv %s202
    %v204 = vmul.f32 %v203, %v187
    %v205 = vmul.f32 %v203, %v189
    %v206 = vadd.f32 %v142, %v204
    %v207 = vadd.f32 %v143, %v205
    %s208 = sld [smem:[#allocation2 + $0x182]]
    %v209 = vstv %s208
    %v210 = vmul.f32 %v209, %v187
    %v211 = vmul.f32 %v209, %v189
    %v212 = vadd.f32 %v148, %v210
    %v213 = vadd.f32 %v149, %v211
    %s214 = sld [smem:[#allocation2 + $0x202]]
    %v215 = vstv %s214
    %v216 = vmul.f32 %v215, %v187
    %v217 = vmul.f32 %v215, %v189
    %v218 = vadd.f32 %v154, %v216
    %v219 = vadd.f32 %v155, %v217
    %s220 = sld [smem:[#allocation2 + $0x282]]
    %v221 = vstv %s220
    %v222 = vmul.f32 %v221, %v187
    %v223 = vmul.f32 %v221, %v189
    %v224 = vadd.f32 %v160, %v222
    %v225 = vadd.f32 %v161, %v223
    %s226 = sld [smem:[#allocation2 + $0x302]]
    %v227 = vstv %s226
    %v228 = vmul.f32 %v227, %v187
    %v229 = vmul.f32 %v227, %v189
    %v230 = vadd.f32 %v166, %v228
    %v231 = vadd.f32 %v167, %v229
    %s232 = sld [smem:[#allocation2 + $0x382]]
    %v233 = vstv %s232
    %v234 = vmul.f32 %v233, %v187
    %v235 = vmul.f32 %v233, %v189
    %v236 = vadd.f32 %v172, %v234
    %v237 = vadd.f32 %v173, %v235
    %s238 = sld [smem:[#allocation2 + $0x402]]
    %v239 = vstv %s238
    %v240 = vmul.f32 %v239, %v187
    %v241 = vmul.f32 %v239, %v189
    %v242 = vadd.f32 %v178, %v240
    %v243 = vadd.f32 %v179, %v241
    %s244 = sld [smem:[#allocation2 + $0x482]]
    %v245 = vstv %s244
    %v246 = vmul.f32 %v245, %v187
    %v247 = vmul.f32 %v245, %v189
    %v248 = vadd.f32 %v184, %v246
    %v249 = vadd.f32 %v185, %v247
    %s250 = scalar_lea.vmem %s0, 3
    %v251 = vld [vmem:[%s250] ss:$4 sm:$0x3]
    %s252 = scalar_lea.vmem %s0, 11
    %v253 = vld [vmem:[%s252] ss:$4 sm:$0x3]
    %s254 = sld [smem:[#allocation2 + $0x3]]
    %v255 = vstv %s254
    %v256 = vmul.f32 %v255, %v251
    %v257 = vmul.f32 %v255, %v253
    %v258 = vadd.f32 %v194, %v256
    %v259 = vadd.f32 %v195, %v257
    %s260 = sld [smem:[#allocation2 + $0x83]]
    %v261 = vstv %s260
    %v262 = vmul.f32 %v261, %v251
    %v263 = vmul.f32 %v261, %v253
    %v264 = vadd.f32 %v200, %v262
    %v265 = vadd.f32 %v201, %v263
    %s266 = sld [smem:[#allocation2 + $0x103]]
    %v267 = vstv %s266
    %v268 = vmul.f32 %v267, %v251
    %v269 = vmul.f32 %v267, %v253
    %v270 = vadd.f32 %v206, %v268
    %v271 = vadd.f32 %v207, %v269
    %s272 = sld [smem:[#allocation2 + $0x183]]
    %v273 = vstv %s272
    %v274 = vmul.f32 %v273, %v251
    %v275 = vmul.f32 %v273, %v253
    %v276 = vadd.f32 %v212, %v274
    %v277 = vadd.f32 %v213, %v275
    %s278 = sld [smem:[#allocation2 + $0x203]]
    %v279 = vstv %s278
    %v280 = vmul.f32 %v279, %v251
    %v281 = vmul.f32 %v279, %v253
    %v282 = vadd.f32 %v218, %v280
    %v283 = vadd.f32 %v219, %v281
    %s284 = sld [smem:[#allocation2 + $0x283]]
    %v285 = vstv %s284
    %v286 = vmul.f32 %v285, %v251
    %v287 = vmul.f32 %v285, %v253
    %v288 = vadd.f32 %v224, %v286
    %v289 = vadd.f32 %v225, %v287
    %s290 = sld [smem:[#allocation2 + $0x303]]
    %v291 = vstv %s290
    %v292 = vmul.f32 %v291, %v251
    %v293 = vmul.f32 %v291, %v253
    %v294 = vadd.f32 %v230, %v292
    %v295 = vadd.f32 %v231, %v293
    %s296 = sld [smem:[#allocation2 + $0x383]]
    %v297 = vstv %s296
    %v298 = vmul.f32 %v297, %v251
    %v299 = vmul.f32 %v297, %v253
    %v300 = vadd.f32 %v236, %v298
    %v301 = vadd.f32 %v237, %v299
    %s302 = sld [smem:[#allocation2 + $0x403]]
    %v303 = vstv %s302
    %v304 = vmul.f32 %v303, %v251
    %v305 = vmul.f32 %v303, %v253
    %v306 = vadd.f32 %v242, %v304
    %v307 = vadd.f32 %v243, %v305
    %s308 = sld [smem:[#allocation2 + $0x483]]
    %v309 = vstv %s308
    %v310 = vmul.f32 %v309, %v251
    %v311 = vmul.f32 %v309, %v253
    %v312 = vadd.f32 %v248, %v310
    %v313 = vadd.f32 %v249, %v311
    %s314 = sld [smem:[#allocation6 + $0x1]]
    %v317 = vcombine.low %v312, %v313
    %v319 = vunpack.c.l.s4 1966171168
    %v320 = vunpack.c.0.s8 %v319
    %v321 = vlaneseq
    %v322 = vshrl.u32 %v321, 7
    %v323 = vsub.s32 %v320, %v322
    %v324 = vrot.slane %v317, %v323
    %v325 = vcombine.high %v324, %v324
    %v327 = vunpack.c.l.s4 1966171168
    %v328 = vunpack.c.0.s8 %v327
    %v329 = vlaneseq
    %v330 = vshrl.u32 %v329, 7
    %v331 = vsub.s32 %v328, %v330
    %v332 = vrot.slane %v324, %v331
    %v334 = vunpack.c.l.s4 1966171168
    %v335 = vunpack.c.0.s8 %v334
    %v336 = vlaneseq
    %v337 = vshrl.u32 %v336, 7
    %v338 = vsub.s32 %v335, %v337
    %v339 = vrot.slane %v325, %v338
    %vm342 = vcmask 1041408
    %v343 = vsel %vm342, %v332, 0.0
    %v344 = vsel %vm342, %v339, 0.0
    %v345 = vadd.f32 %v343, %v344
    %346 = vadd.xlane.f32.xlu0 %v345
    %v347 = vpop.xlane.xlu0 %346
    %v348 = vmul.f32 %v347, 0.00390625
    %v349 = vstv %s314
    %v350 = vadd.f32 %v349, %v348
    %v353 = vcombine.low %v258, %v259
    %v355 = vunpack.c.l.s4 1966171168
    %v356 = vunpack.c.0.s8 %v355
    %v357 = vlaneseq
    %v358 = vshrl.u32 %v357, 7
    %v359 = vsub.s32 %v356, %v358
    %v360 = vrot.slane %v353, %v359
    %v361 = vcombine.high %v360, %v360
    %v363 = vunpack.c.l.s4 1966171168
    %v364 = vunpack.c.0.s8 %v363
    %v365 = vlaneseq
    %v366 = vshrl.u32 %v365, 7
    %v367 = vsub.s32 %v364, %v366
    %v368 = vrot.slane %v360, %v367
    %v370 = vunpack.c.l.s4 1966171168
    %v371 = vunpack.c.0.s8 %v370
    %v372 = vlaneseq
    %v373 = vshrl.u32 %v372, 7
    %v374 = vsub.s32 %v371, %v373
    %v375 = vrot.slane %v361, %v374
    %378 = vrot.lane.b32.xlu0 %v368, 17
    %v379 = vpop.permute.xlu0 %378
    %380 = vrot.lane.b32.xlu0 %v375, 17
    %v381 = vpop.permute.xlu0 %380
    %v382 = vlaneseq
    %v383 = vand.u32 %v382, 127
    %vm384 = vcmp.lt.s32.totalorder %v383, 17
    %v385 = vsel %vm384, %v379, %v381
    %v386 = vsel %vm384, %v381, %v379
    %v387 = vld [vmem:[#allocation8] ss:$8 sm:$0x3]
    %v389 = vlaneseq
    %v390 = vshrl.u32 %v389, 7
    %v391 = vsub.s32 0, %v390
    %v392 = vrot.slane %v387, %v391
    %v393 = vlaneseq
    %v394 = vshrl.u32 %v393, 7
    %v395 = vsub.s32 1, %v394
    %v396 = vrot.slane %v387, %v395
    %v399 = vmul.f32 %v386, %v392
    %v400 = vmul.f32 %v385, %v396
    %v401 = vadd.f32 %v399, 0.0
    %v402 = vadd.f32 %v400, 0.0
    %v405 = vcombine.low %v264, %v265
    %v407 = vunpack.c.l.s4 1966171168
    %v408 = vunpack.c.0.s8 %v407
    %v409 = vlaneseq
    %v410 = vshrl.u32 %v409, 7
    %v411 = vsub.s32 %v408, %v410
    %v412 = vrot.slane %v405, %v411
    %v413 = vcombine.high %v412, %v412
    %v415 = vunpack.c.l.s4 1966171168
    %v416 = vunpack.c.0.s8 %v415
    %v417 = vlaneseq
    %v418 = vshrl.u32 %v417, 7
    %v419 = vsub.s32 %v416, %v418
    %v420 = vrot.slane %v412, %v419
    %v422 = vunpack.c.l.s4 1966171168
    %v423 = vunpack.c.0.s8 %v422
    %v424 = vlaneseq
    %v425 = vshrl.u32 %v424, 7
    %v426 = vsub.s32 %v423, %v425
    %v427 = vrot.slane %v413, %v426
    %430 = vrot.lane.b32.xlu0 %v420, 16
    %v431 = vpop.permute.xlu0 %430
    %432 = vrot.lane.b32.xlu0 %v427, 16
    %v433 = vpop.permute.xlu0 %432
    %vm434 = vcmp.lt.s32.totalorder %v383, 16
    %v435 = vsel %vm434, %v431, %v433
    %v436 = vsel %vm434, %v433, %v431
    %s437 = scalar_lea.vmem [#allocation8], 1
    %v438 = vld [vmem:[%s437] ss:$8 sm:$0x3]
    %v440 = vlaneseq
    %v441 = vshrl.u32 %v440, 7
    %v442 = vsub.s32 0, %v441
    %v443 = vrot.slane %v438, %v442
    %v444 = vlaneseq
    %v445 = vshrl.u32 %v444, 7
    %v446 = vsub.s32 1, %v445
    %v447 = vrot.slane %v438, %v446
    %v450 = vmul.f32 %v436, %v443
    %v451 = vmul.f32 %v435, %v447
    %v452 = vadd.f32 %v401, %v450
    %v453 = vadd.f32 %v402, %v451
    %v456 = vcombine.low %v270, %v271
    %v458 = vunpack.c.l.s4 1966171168
    %v459 = vunpack.c.0.s8 %v458
    %v460 = vlaneseq
    %v461 = vshrl.u32 %v460, 7
    %v462 = vsub.s32 %v459, %v461
    %v463 = vrot.slane %v456, %v462
    %v464 = vcombine.high %v463, %v463
    %v466 = vunpack.c.l.s4 1966171168
    %v467 = vunpack.c.0.s8 %v466
    %v468 = vlaneseq
    %v469 = vshrl.u32 %v468, 7
    %v470 = vsub.s32 %v467, %v469
    %v471 = vrot.slane %v463, %v470
    %v473 = vunpack.c.l.s4 1966171168
    %v474 = vunpack.c.0.s8 %v473
    %v475 = vlaneseq
    %v476 = vshrl.u32 %v475, 7
    %v477 = vsub.s32 %v474, %v476
    %v478 = vrot.slane %v464, %v477
    %481 = vrot.lane.b32.xlu0 %v471, 15
    %v482 = vpop.permute.xlu0 %481
    %483 = vrot.lane.b32.xlu0 %v478, 15
    %v484 = vpop.permute.xlu0 %483
    %vm485 = vcmp.lt.s32.totalorder %v383, 15
    %v486 = vsel %vm485, %v482, %v484
    %v487 = vsel %vm485, %v484, %v482
    %s488 = scalar_lea.vmem [#allocation8], 2
    %v489 = vld [vmem:[%s488] ss:$8 sm:$0x3]
    %v491 = vlaneseq
    %v492 = vshrl.u32 %v491, 7
    %v493 = vsub.s32 0, %v492
    %v494 = vrot.slane %v489, %v493
    %v495 = vlaneseq
    %v496 = vshrl.u32 %v495, 7
    %v497 = vsub.s32 1, %v496
    %v498 = vrot.slane %v489, %v497
    %v501 = vmul.f32 %v487, %v494
    %v502 = vmul.f32 %v486, %v498
    %v503 = vadd.f32 %v452, %v501
    %v504 = vadd.f32 %v453, %v502
    %v507 = vcombine.low %v276, %v277
    %v509 = vunpack.c.l.s4 1966171168
    %v510 = vunpack.c.0.s8 %v509
    %v511 = vlaneseq
    %v512 = vshrl.u32 %v511, 7
    %v513 = vsub.s32 %v510, %v512
    %v514 = vrot.slane %v507, %v513
    %v515 = vcombine.high %v514, %v514
    %v517 = vunpack.c.l.s4 1966171168
    %v518 = vunpack.c.0.s8 %v517
    %v519 = vlaneseq
    %v520 = vshrl.u32 %v519, 7
    %v521 = vsub.s32 %v518, %v520
    %v522 = vrot.slane %v514, %v521
    %v524 = vunpack.c.l.s4 1966171168
    %v525 = vunpack.c.0.s8 %v524
    %v526 = vlaneseq
    %v527 = vshrl.u32 %v526, 7
    %v528 = vsub.s32 %v525, %v527
    %v529 = vrot.slane %v515, %v528
    %532 = vrot.lane.b32.xlu0 %v522, 1
    %v533 = vpop.permute.xlu0 %532
    %534 = vrot.lane.b32.xlu0 %v529, 1
    %v535 = vpop.permute.xlu0 %534
    %vm536 = vcmp.lt.s32.totalorder %v383, 1
    %v537 = vsel %vm536, %v533, %v535
    %v538 = vsel %vm536, %v535, %v533
    %s539 = scalar_lea.vmem [#allocation8], 3
    %v540 = vld [vmem:[%s539] ss:$8 sm:$0x3]
    %v542 = vlaneseq
    %v543 = vshrl.u32 %v542, 7
    %v544 = vsub.s32 0, %v543
    %v545 = vrot.slane %v540, %v544
    %v546 = vlaneseq
    %v547 = vshrl.u32 %v546, 7
    %v548 = vsub.s32 1, %v547
    %v549 = vrot.slane %v540, %v548
    %v552 = vmul.f32 %v538, %v545
    %v553 = vmul.f32 %v537, %v549
    %v554 = vadd.f32 %v503, %v552
    %v555 = vadd.f32 %v504, %v553
    %v558 = vcombine.low %v282, %v283
    %v560 = vunpack.c.l.s4 1966171168
    %v561 = vunpack.c.0.s8 %v560
    %v562 = vlaneseq
    %v563 = vshrl.u32 %v562, 7
    %v564 = vsub.s32 %v561, %v563
    %v565 = vrot.slane %v558, %v564
    %v566 = vcombine.high %v565, %v565
    %v568 = vunpack.c.l.s4 1966171168
    %v569 = vunpack.c.0.s8 %v568
    %v570 = vlaneseq
    %v571 = vshrl.u32 %v570, 7
    %v572 = vsub.s32 %v569, %v571
    %v573 = vrot.slane %v565, %v572
    %v575 = vunpack.c.l.s4 1966171168
    %v576 = vunpack.c.0.s8 %v575
    %v577 = vlaneseq
    %v578 = vshrl.u32 %v577, 7
    %v579 = vsub.s32 %v576, %v578
    %v580 = vrot.slane %v566, %v579
    %v583 = vadd.f32 %v554, %v573
    %v584 = vadd.f32 %v555, %v580
    %v587 = vcombine.low %v288, %v289
    %v589 = vunpack.c.l.s4 1966171168
    %v590 = vunpack.c.0.s8 %v589
    %v591 = vlaneseq
    %v592 = vshrl.u32 %v591, 7
    %v593 = vsub.s32 %v590, %v592
    %v594 = vrot.slane %v587, %v593
    %v595 = vcombine.high %v594, %v594
    %v597 = vunpack.c.l.s4 1966171168
    %v598 = vunpack.c.0.s8 %v597
    %v599 = vlaneseq
    %v600 = vshrl.u32 %v599, 7
    %v601 = vsub.s32 %v598, %v600
    %v602 = vrot.slane %v594, %v601
    %v604 = vunpack.c.l.s4 1966171168
    %v605 = vunpack.c.0.s8 %v604
    %v606 = vlaneseq
    %v607 = vshrl.u32 %v606, 7
    %v608 = vsub.s32 %v605, %v607
    %v609 = vrot.slane %v595, %v608
    %612 = vrot.lane.b32.xlu0 %v602, 127
    %v613 = vpop.permute.xlu0 %612
    %614 = vrot.lane.b32.xlu0 %v609, 127
    %v615 = vpop.permute.xlu0 %614
    %vm616 = vcmp.lt.s32.totalorder %v383, 127
    %v617 = vsel %vm616, %v613, %v615
    %v618 = vsel %vm616, %v615, %v613
    %s619 = scalar_lea.vmem [#allocation8], 5
    %v620 = vld [vmem:[%s619] ss:$8 sm:$0x3]
    %v622 = vlaneseq
    %v623 = vshrl.u32 %v622, 7
    %v624 = vsub.s32 0, %v623
    %v625 = vrot.slane %v620, %v624
    %v626 = vlaneseq
    %v627 = vshrl.u32 %v626, 7
    %v628 = vsub.s32 1, %v627
    %v629 = vrot.slane %v620, %v628
    %v632 = vmul.f32 %v617, %v625
    %v633 = vmul.f32 %v618, %v629
    %v634 = vadd.f32 %v583, %v632
    %v635 = vadd.f32 %v584, %v633
    %v638 = vcombine.low %v294, %v295
    %v640 = vunpack.c.l.s4 1966171168
    %v641 = vunpack.c.0.s8 %v640
    %v642 = vlaneseq
    %v643 = vshrl.u32 %v642, 7
    %v644 = vsub.s32 %v641, %v643
    %v645 = vrot.slane %v638, %v644
    %v646 = vcombine.high %v645, %v645
    %v648 = vunpack.c.l.s4 1966171168
    %v649 = vunpack.c.0.s8 %v648
    %v650 = vlaneseq
    %v651 = vshrl.u32 %v650, 7
    %v652 = vsub.s32 %v649, %v651
    %v653 = vrot.slane %v645, %v652
    %v655 = vunpack.c.l.s4 1966171168
    %v656 = vunpack.c.0.s8 %v655
    %v657 = vlaneseq
    %v658 = vshrl.u32 %v657, 7
    %v659 = vsub.s32 %v656, %v658
    %v660 = vrot.slane %v646, %v659
    %663 = vrot.lane.b32.xlu0 %v653, 113
    %v664 = vpop.permute.xlu0 %663
    %665 = vrot.lane.b32.xlu0 %v660, 113
    %v666 = vpop.permute.xlu0 %665
    %vm667 = vcmp.lt.s32.totalorder %v383, 113
    %v668 = vsel %vm667, %v664, %v666
    %v669 = vsel %vm667, %v666, %v664
    %s670 = scalar_lea.vmem [#allocation8], 6
    %v671 = vld [vmem:[%s670] ss:$8 sm:$0x3]
    %v673 = vlaneseq
    %v674 = vshrl.u32 %v673, 7
    %v675 = vsub.s32 0, %v674
    %v676 = vrot.slane %v671, %v675
    %v677 = vlaneseq
    %v678 = vshrl.u32 %v677, 7
    %v679 = vsub.s32 1, %v678
    %v680 = vrot.slane %v671, %v679
    %v683 = vmul.f32 %v668, %v676
    %v684 = vmul.f32 %v669, %v680
    %v685 = vadd.f32 %v634, %v683
    %v686 = vadd.f32 %v635, %v684
    %v689 = vcombine.low %v300, %v301
    %v691 = vunpack.c.l.s4 1966171168
    %v692 = vunpack.c.0.s8 %v691
    %v693 = vlaneseq
    %v694 = vshrl.u32 %v693, 7
    %v695 = vsub.s32 %v692, %v694
    %v696 = vrot.slane %v689, %v695
    %v697 = vcombine.high %v696, %v696
    %v699 = vunpack.c.l.s4 1966171168
    %v700 = vunpack.c.0.s8 %v699
    %v701 = vlaneseq
    %v702 = vshrl.u32 %v701, 7
    %v703 = vsub.s32 %v700, %v702
    %v704 = vrot.slane %v696, %v703
    %v706 = vunpack.c.l.s4 1966171168
    %v707 = vunpack.c.0.s8 %v706
    %v708 = vlaneseq
    %v709 = vshrl.u32 %v708, 7
    %v710 = vsub.s32 %v707, %v709
    %v711 = vrot.slane %v697, %v710
    %714 = vrot.lane.b32.xlu0 %v704, 112
    %v715 = vpop.permute.xlu0 %714
    %716 = vrot.lane.b32.xlu0 %v711, 112
    %v717 = vpop.permute.xlu0 %716
    %vm718 = vcmp.lt.s32.totalorder %v383, 112
    %v719 = vsel %vm718, %v715, %v717
    %v720 = vsel %vm718, %v717, %v715
    %s721 = scalar_lea.vmem [#allocation8], 7
    %v722 = vld [vmem:[%s721] ss:$8 sm:$0x3]
    %v724 = vlaneseq
    %v725 = vshrl.u32 %v724, 7
    %v726 = vsub.s32 0, %v725
    %v727 = vrot.slane %v722, %v726
    %v728 = vlaneseq
    %v729 = vshrl.u32 %v728, 7
    %v730 = vsub.s32 1, %v729
    %v731 = vrot.slane %v722, %v730
    %v734 = vmul.f32 %v719, %v727
    %v735 = vmul.f32 %v720, %v731
    %v736 = vadd.f32 %v685, %v734
    %v737 = vadd.f32 %v686, %v735
    %v740 = vcombine.low %v306, %v307
    %v742 = vunpack.c.l.s4 1966171168
    %v743 = vunpack.c.0.s8 %v742
    %v744 = vlaneseq
    %v745 = vshrl.u32 %v744, 7
    %v746 = vsub.s32 %v743, %v745
    %v747 = vrot.slane %v740, %v746
    %v748 = vcombine.high %v747, %v747
    %v750 = vunpack.c.l.s4 1966171168
    %v751 = vunpack.c.0.s8 %v750
    %v752 = vlaneseq
    %v753 = vshrl.u32 %v752, 7
    %v754 = vsub.s32 %v751, %v753
    %v755 = vrot.slane %v747, %v754
    %v757 = vunpack.c.l.s4 1966171168
    %v758 = vunpack.c.0.s8 %v757
    %v759 = vlaneseq
    %v760 = vshrl.u32 %v759, 7
    %v761 = vsub.s32 %v758, %v760
    %v762 = vrot.slane %v748, %v761
    %765 = vrot.lane.b32.xlu0 %v755, 111
    %v766 = vpop.permute.xlu0 %765
    %767 = vrot.lane.b32.xlu0 %v762, 111
    %v768 = vpop.permute.xlu0 %767
    %vm769 = vcmp.lt.s32.totalorder %v383, 111
    %v770 = vsel %vm769, %v766, %v768
    %v771 = vsel %vm769, %v768, %v766
    %s772 = scalar_lea.vmem [#allocation8], 16
    %v773 = vld [vmem:[%s772] ss:$8 sm:$0x3]
    %v775 = vlaneseq
    %v776 = vshrl.u32 %v775, 7
    %v777 = vsub.s32 0, %v776
    %v778 = vrot.slane %v773, %v777
    %v779 = vlaneseq
    %v780 = vshrl.u32 %v779, 7
    %v781 = vsub.s32 1, %v780
    %v782 = vrot.slane %v773, %v781
    %v785 = vmul.f32 %v770, %v778
    %v786 = vmul.f32 %v771, %v782
    %v787 = vadd.f32 %v736, %v785
    %v788 = vadd.f32 %v737, %v786
    %s789 = sld [smem:[#allocation6]]
    %v790 = vstv %s789
    %v791 = vadd.f32 %v790, %v350
    %v792 = vadd.f32 %v787, %v791
    %v793 = vadd.f32 %v788, %v791
    %v796 = vcombine.low %v792, %v793
    %v798 = vunpack.c.l.s4 1983009808
    %v799 = vunpack.c.0.s8 %v798
    %v800 = vlaneseq
    %v801 = vshrl.u32 %v800, 7
    %v802 = vsub.s32 %v799, %v801
    %v803 = vrot.slane %v796, %v802
    %805 = vst [vmem:[#allocation9] sm:$0xf] %v803
    // Predicated region
    $region30: #{tpu_custom_call.1} parent=1 // pred_check
      _
    $region31: #{tpu_custom_call.1} parent=1 // pred_check_branch
      %807 = sbr.rel (0) target = $region33
    $region32: #{tpu_custom_call.1} parent=1 // pred_region
      %s809 = ssub.s32 64, 64
      %810 = vsyncadd [#allocation4], %s809
      %s812 = sshll.u32 [#allocation9], 4
      %s813 = int_to_ptr.vmem [resolvable:$true] %s812
      %815 = dma.vmem_to_hbm [thread:$0]  %s813, 64, %s4, [#allocation4]
    $region33: #{tpu_custom_call.1} parent=1 // pred_fallthru
      _
    // Predicated region
    $region34: #{tpu_custom_call.1} parent=1 // pred_check
      _
    $region35: #{tpu_custom_call.1} parent=1 // pred_check_branch
      %817 = sbr.rel (0) target = $region37
    $region36: #{tpu_custom_call.1} parent=1 // pred_region
      %818 = dma.done [#allocation4], 64
    $region37: #{tpu_custom_call.1} parent=1 // pred_fallthru
      _
    %819 = vsyncpa [#allocation3], 1
    %820 = vsyncpa [#allocation4], 1
    %821 = vsyncpa [#allocation5], 1
    %822 = vsyncpa [#allocation7], 1

</llo_original>
